<compile_context>
chip_gen: v6e
topology: v6e:2x2x1
jax: 0.10.0
libtpu: 0.0.40
codegen_flags: <defaults>
</compile_context>

<pallas_src>
import math

import jax
import jax.numpy as jnp
from jax.experimental import pallas as pl
from jax.experimental.pallas import tpu as pltpu

LANE = 128
VMEM_BLOCK_BUDGET = 24 * 1024 * 1024    # target for double-buffered block working set
SCOPED_VMEM_LIMIT = 32 * 1024 * 1024    # explicit scoped-VMEM limit (safe on all gens)


# ----------------------------------------------------------------------------
# Parameter / buffer construction (deterministic, mirrors nn.Module.__init__)
# ----------------------------------------------------------------------------
def generate_encoder(in_channels, max_len):
    """Matches PositionalEncoding2D.generate_encoder exactly (float32)."""
    pos = jnp.arange(max_len, dtype=jnp.float32)[:, None]          # (max_len, 1)
    i = jnp.arange(in_channels, dtype=jnp.float32)[None, :]        # (1, in_channels)
    angle_rates = 1.0 / jnp.power(10000.0, 2.0 * jnp.floor(i / 2.0) / in_channels)
    pe = pos * angle_rates                                          # (max_len, in_channels)
    pe = pe.at[:, 0::2].set(jnp.sin(pe[:, 0::2]))
    pe = pe.at[:, 1::2].set(jnp.cos(pe[:, 1::2]))
    return pe


def init_linear(key, fan_in, fan_out):
    """Deterministic nn.Linear-style uniform init: U(-1/sqrt(fan_in), 1/sqrt(fan_in))."""
    kw, kb = jax.random.split(key)
    bound = 1.0 / jnp.sqrt(jnp.float32(fan_in))
    W = jax.random.uniform(kw, (fan_out, fan_in), jnp.float32, -bound, bound)
    b = jax.random.uniform(kb, (fan_out,), jnp.float32, -bound, bound)
    return W, b


# ----------------------------------------------------------------------------
# Batch-invariant positional map (hoisted out of the per-call forward; callers
# should cache this per (h, w) — it does not depend on x).
# ----------------------------------------------------------------------------
def build_pos_map(h_enc_full, w_enc_full, hW, hb, wW, wb, h, w, dtype=jnp.float32):
    c2 = hW.shape[0]
    h_lin = h_enc_full[:h] @ hW.T + hb                            # (h, c2)
    w_lin = w_enc_full[:w] @ wW.T + wb                            # (w, c2)
    h_part = jnp.broadcast_to(h_lin.T[:, :, None], (c2, h, w))    # pos[ch,i,j] = h_lin[i,ch]
    w_part = jnp.broadcast_to(w_lin.T[:, None, :], (c2, h, w))    # pos[c2+ch,i,j] = w_lin[j,ch]
    pos = jnp.concatenate([h_part, w_part], axis=0)               # (c, h, w)
    return pos.reshape(2 * c2, h * w).astype(dtype)               # (C, H*W), lane-dense


# ----------------------------------------------------------------------------
# Pallas kernel: pure streaming elementwise add over sublane/lane-dense tiles
# ----------------------------------------------------------------------------
def pe2d_add_kernel(x_ref, pos_ref, o_ref):
    # x_ref / pos_ref / o_ref: (row_block, col_block).  One VPU add per vreg,
    # unmasked lane-dense loads/stores; the pos tile stays resident across the
    # inner (row / batch) grid axis.
    o_ref[...] = x_ref[...] + pos_ref[...]
    # TODO(synk): dropout is identity here (eval mode); training-mode dropout
    # would use pltpu.prng_seed / pltpu.stateful_bernoulli.


def _sublane_pack(dtype):
    itemsize = jnp.dtype(dtype).itemsize
    return 8 * max(1, 4 // itemsize)        # 8 (f32), 16 (bf16), 32 (int8)


def _round_up(a, m):
    return ((a + m - 1) // m) * m


def _pick_blocks(b, c, hw, dtype):
    """Pick (row_block, col_block, hw_pad) for the flattened (B*C, H*W) layout.

    row_block: multiple of lcm(C, sublane_pack) (sublane-dense AND aligned to the
               channel period so pos can be tiled once in the wrapper); falls back
               to the full row extent when that does not divide B*C.
    col_block: multiple of 128 dividing hw_pad, byte-budgeted so the
               double-buffered working set (x + out + pos tiles) stays <= ~24 MiB.
    """
    itemsize = jnp.dtype(dtype).itemsize
    pack = _sublane_pack(dtype)
    rows = b * c

    row_unit = (c * pack) // math.gcd(c, pack)          # lcm(c, pack)
    row_block = row_unit if rows % row_unit == 0 else rows

    if hw < LANE:                                       # tiny map: take it whole
        return row_block, hw, hw

    hw_pad = _round_up(hw, LANE)
    n128 = hw_pad // LANE
    # 3 streams (x, out, pos) x 2 pipeline buffers x row_block x col x itemsize
    col_cap = max(LANE, VMEM_BLOCK_BUDGET // (6 * row_block * itemsize))
    col_block = LANE
    for d in range(1, n128 + 1):
        if n128 % d == 0 and d * LANE <= col_cap:
            col_block = d * LANE
    return row_block, col_block, hw_pad


# ----------------------------------------------------------------------------
# Forward: x (B, C, H, W) + pos (C, H*W), broadcast over batch
# ----------------------------------------------------------------------------
def positional_encoding_2d_add(x, pos):
    b, c, h, w = x.shape
    hw = h * w
    dtype = x.dtype

    row_block, col_block, hw_pad = _pick_blocks(b, c, hw, dtype)
    rows = b * c

    x2 = x.reshape(rows, hw)                 # free reshape: collapse contiguous dims
    pos2 = pos.astype(dtype)
    if row_block != c:
        # Tile the tiny pos up to the row-block height so every row block reads
        # the same (row_block, col_block) pos tile (row_block is a multiple of C).
        pos2 = jnp.tile(pos2, (row_block // c, 1))

    if hw_pad != hw:
        pad = hw_pad - hw
        x2 = jnp.pad(x2, ((0, 0), (0, pad)))
        pos2 = jnp.pad(pos2, ((0, 0), (0, pad)))

    grid = (hw_pad // col_block, rows // row_block)     # rows innermost -> pos tile reused
    vmem_needed = 6 * row_block * col_block * jnp.dtype(dtype).itemsize

    out2 = pl.pallas_call(
        pe2d_add_kernel,
        out_shape=jax.ShapeDtypeStruct((rows, hw_pad), dtype),
        grid_spec=pltpu.PrefetchScalarGridSpec(
            num_scalar_prefetch=0,
            grid=grid,
            in_specs=[
                pl.BlockSpec((row_block, col_block), lambda j, i: (i, j)),   # x
                pl.BlockSpec((row_block, col_block), lambda j, i: (0, j)),   # pos (batch-resident)
            ],
            out_specs=pl.BlockSpec((row_block, col_block), lambda j, i: (i, j)),
        ),
        compiler_params=pltpu.CompilerParams(
            dimension_semantics=("parallel", "parallel"),
            vmem_limit_bytes=max(SCOPED_VMEM_LIMIT, 2 * vmem_needed)),
        # TODO(synk): a production wrapper would dispatch to a plain XLA add for
        # tiny tensors (pallas_call overhead dominates) and could pass
        # input_output_aliases={0: 0} when the caller donates x.
    )(x2, pos2)

    if hw_pad != hw:
        out2 = out2[:, :hw]
    return out2.reshape(b, c, h, w)


def positional_encoding_2d(x, h_enc_full, w_enc_full, hW, hb, wW, wb):
    """Convenience forward (builds pos; prefer caching build_pos_map per shape)."""
    b, c, h, w = x.shape
    assert c % 2 == 0, "PositionalEncoding2D requires an even channel count"
    pos = build_pos_map(h_enc_full, w_enc_full, hW, hb, wW, wb, h, w, dtype=x.dtype)
    return positional_encoding_2d_add(x, pos)


# ----------------------------------------------------------------------------
# Pure-JAX reference (mirrors the PyTorch forward, eval mode)
# ----------------------------------------------------------------------------
def ref_forward(x, h_enc_full, w_enc_full, hW, hb, wW, wb):
    b, c, h, w = x.shape
    c2 = c // 2
    h_lin = h_enc_full[:h] @ hW.T + hb                      # (h, c2)
    w_lin = w_enc_full[:w] @ wW.T + wb                      # (w, c2)
    h_pos = jnp.broadcast_to(h_lin[:, None, :], (h, w, c2))
    w_pos = jnp.broadcast_to(w_lin[None, :, :], (h, w, c2))
    pos = jnp.concatenate([h_pos, w_pos], axis=2)           # (h, w, c)
    pos = jnp.transpose(pos, (2, 0, 1))                     # (c, h, w)
    return x + pos[None]


if __name__ == "__main__":
    # Small shapes consistent with the module: batch=2, channels=4, 16x16 feature map
    B, C, H, W = 2, 4, 16, 16
    MAX_H, MAX_W = 64, 128
    C2 = C // 2

    key = jax.random.PRNGKey(0)
    kx, kh, kw = jax.random.split(key, 3)

    x = jax.random.normal(kx, (B, C, H, W), jnp.float32)

    h_position_encoder = generate_encoder(C2, MAX_H)        # (64, C//2)
    w_position_encoder = generate_encoder(C2, MAX_W)        # (128, C//2)
    hW, hb = init_linear(kh, C2, C2)
    wW, wb = init_linear(kw, C2, C2)

    # pos map is batch-invariant: build it once per (H, W) and reuse across calls.
    pos = build_pos_map(h_position_encoder, w_position_encoder,
                        hW, hb, wW, wb, H, W, dtype=x.dtype)

    out = positional_encoding_2d_add(x, pos)
    out = jax.block_until_ready(out)

    ref = ref_forward(x, h_position_encoder, w_position_encoder, hW, hb, wW, wb)
    assert out.shape == (B, C, H, W)
    assert jnp.allclose(out, ref, atol=1e-5, rtol=1e-5), "mismatch vs reference"

    print("KERNEL_OK")
</pallas_src>

<mosaic_0001>
module attributes {stable_mosaic.version = 11 : i64} {
  func.func @pe2d_add_kernel(%arg0: i32, %arg1: i32, %arg2: memref<8x256xf32, #tpu.memory_space<vmem>>, %arg3: memref<8x256xf32, #tpu.memory_space<vmem>>, %arg4: memref<8x256xf32, #tpu.memory_space<vmem>>) attributes {dimension_semantics = [#tpu.dimension_semantics<parallel>, #tpu.dimension_semantics<parallel>], iteration_bounds = array<i64: 1, 1>, scalar_prefetch = 0 : i64, scratch_operands = 0 : i64, tpu.core_type = #tpu.core_type<tc>, window_params = [{transform_indices = @transform_0, window_bounds = array<i64: 8, 256>}, {transform_indices = @transform_1, window_bounds = array<i64: 8, 256>}, {transform_indices = @transform_2, window_bounds = array<i64: 8, 256>}]} {
    %c0 = arith.constant 0 : index
    %c0_0 = arith.constant 0 : index
    %0 = vector.load %arg2[%c0, %c0_0] : memref<8x256xf32, #tpu.memory_space<vmem>>, vector<8x256xf32>
    %c0_1 = arith.constant 0 : index
    %c0_2 = arith.constant 0 : index
    %1 = vector.load %arg3[%c0_1, %c0_2] : memref<8x256xf32, #tpu.memory_space<vmem>>, vector<8x256xf32>
    %2 = arith.addf %0, %1 : vector<8x256xf32>
    %c0_3 = arith.constant 0 : index
    %c0_4 = arith.constant 0 : index
    %3 = vector.load %arg4[%c0_3, %c0_4] : memref<8x256xf32, #tpu.memory_space<vmem>>, vector<8x256xf32>
    tpu.vector_store %arg4[%c0_3, %c0_4], %2 {strides = array<i32>} : memref<8x256xf32, #tpu.memory_space<vmem>>, vector<8x256xf32>,
    return
  }
  func.func @transform_0(%arg0: i32, %arg1: i32) -> (i32, i32) {
    %c0_i32 = arith.constant 0 : i32
    return %arg1, %arg0 : i32, i32
  }
  func.func @transform_1(%arg0: i32, %arg1: i32) -> (i32, i32) {
    %c0_i32 = arith.constant 0 : i32
    %c0_i32_0 = arith.constant 0 : i32
    return %c0_i32, %arg0 : i32, i32
  }
  func.func @transform_2(%arg0: i32, %arg1: i32) -> (i32, i32) {
    %c0_i32 = arith.constant 0 : i32
    return %arg1, %arg0 : i32, i32
  }
}

</mosaic_0001>

<llo_original>
// kernel: tpu_custom_call.1
$region0: #{tpu_custom_call.1}
  #allocation0 [shape = 'u32[]', space=smem, size = 0x4, offset = 0x4, fixed_abs, tag = 'smem constant byte address 0x4 - core index']
  #allocation1 [shape = 'u32[144,128]{1,0:T(1,128)}', space=vmem, size = 0x12000, scoped, tag = 'internal scratch']
  %s0 = inlined_call_operand.hbm [shape: f32[8,256], index: 0, kind: input, shape index: {}]
  %s1 = inlined_call_operand.hbm [shape: f32[8,256], index: 1, kind: input, shape index: {}]
  %s2 = inlined_call_operand.hbm [shape: f32[8,256], index: 2, kind: output, shape index: {}]
  %s3 = sld [smem:[#allocation0]]
  $region26: #{tpu_custom_call.1} parent=0
    _
  %s5 = ssub.s32 1, %s3
  %s6 = scalar_select 0, %s5, %s3
  $region1: #{tpu_custom_call.1} parent=0
    #allocation2 [shape = 'u8[8192]{0}', space=vmem, size = 0x2000, scoped, tag = 'input window, operand 0, single buffered']
    #allocation3 [shape = 's32[1]{0}', space=sflag, size = 0x4, scoped, tag = 'scoped memory for tpu_custom_call.1']
    #allocation4 [shape = 's32[1]{0}', space=sflag, size = 0x4, scoped, tag = 'scoped memory for tpu_custom_call.1']
    #allocation5 [shape = 'u8[8192]{0}', space=vmem, size = 0x2000, scoped, tag = 'input window, operand 1, single buffered']
    #allocation6 [shape = 's32[1]{0}', space=sflag, size = 0x4, scoped, tag = 'scoped memory for tpu_custom_call.1']
    #allocation7 [shape = 'u8[8192]{0}', space=vmem, size = 0x2000, scoped, tag = 'output window, operand 0, single buffered']
    %7 = vsyncpa [#allocation3], 0
    %8 = vsyncpa [#allocation6], 0
    %9 = vsyncpa [#allocation4], 0
    // Predicated region
    $region2: #{tpu_custom_call.1} parent=1 // pred_check
      _
    $region3: #{tpu_custom_call.1} parent=1 // pred_check_branch
      %11 = sbr.rel (0) target = $region5
    $region4: #{tpu_custom_call.1} parent=1 // pred_region
      %s13 = ssub.s32 256, 256
      %14 = vsyncadd [#allocation3], %s13
      %s16 = sshll.u32 [#allocation2], 4
      %s17 = int_to_ptr.vmem [resolvable:$true] %s16
      %19 = dma.hbm_to_vmem [thread:$0]  %s0, 256, %s17, [#allocation3]
    $region5: #{tpu_custom_call.1} parent=1 // pred_fallthru
      _
    // Predicated region
    $region6: #{tpu_custom_call.1} parent=1 // pred_check
      _
    $region7: #{tpu_custom_call.1} parent=1 // pred_check_branch
      %21 = sbr.rel (0) target = $region9
    $region8: #{tpu_custom_call.1} parent=1 // pred_region
      %s23 = ssub.s32 256, 256
      %24 = vsyncadd [#allocation6], %s23
      %s26 = sshll.u32 [#allocation5], 4
      %s27 = int_to_ptr.vmem [resolvable:$true] %s26
      %29 = dma.hbm_to_vmem [thread:$0]  %s1, 256, %s27, [#allocation6]
    $region9: #{tpu_custom_call.1} parent=1 // pred_fallthru
      _
    // Predicated region
    $region10: #{tpu_custom_call.1} parent=1 // pred_check
      _
    $region11: #{tpu_custom_call.1} parent=1 // pred_check_branch
      %31 = sbr.rel (0) target = $region13
    $region12: #{tpu_custom_call.1} parent=1 // pred_region
      %32 = dma.done [#allocation3], 256
    $region13: #{tpu_custom_call.1} parent=1 // pred_fallthru
      _
    // Predicated region
    $region14: #{tpu_custom_call.1} parent=1 // pred_check
      _
    $region15: #{tpu_custom_call.1} parent=1 // pred_check_branch
      %34 = sbr.rel (0) target = $region17
    $region16: #{tpu_custom_call.1} parent=1 // pred_region
      %35 = dma.done [#allocation6], 256
    $region17: #{tpu_custom_call.1} parent=1 // pred_fallthru
      _
    %v36 = vld [vmem:[#allocation2] sm:$0xff]
    %v37 = vld [vmem:[#allocation2 + $0x8] sm:$0xff]
    %v38 = vld [vmem:[#allocation5] sm:$0xff]
    %v39 = vld [vmem:[#allocation5 + $0x8] sm:$0xff]
    %v40 = vadd.f32 %v36, %v38
    %v41 = vadd.f32 %v37, %v39
    %42 = vst [vmem:[#allocation7] sm:$0xff] %v40
    %43 = vst [vmem:[#allocation7 + $0x8] sm:$0xff] %v41
    // Predicated region
    $region18: #{tpu_custom_call.1} parent=1 // pred_check
      _
    $region19: #{tpu_custom_call.1} parent=1 // pred_check_branch
      %45 = sbr.rel (0) target = $region21
    $region20: #{tpu_custom_call.1} parent=1 // pred_region
      %s47 = ssub.s32 256, 256
      %48 = vsyncadd [#allocation4], %s47
      %s50 = sshll.u32 [#allocation7], 4
      %s51 = int_to_ptr.vmem [resolvable:$true] %s50
      %53 = dma.vmem_to_hbm [thread:$0]  %s51, 256, %s2, [#allocation4]
    $region21: #{tpu_custom_call.1} parent=1 // pred_fallthru
      _
    // Predicated region
    $region22: #{tpu_custom_call.1} parent=1 // pred_check
      _
    $region23: #{tpu_custom_call.1} parent=1 // pred_check_branch
      %55 = sbr.rel (0) target = $region25
    $region24: #{tpu_custom_call.1} parent=1 // pred_region
      %56 = dma.done [#allocation4], 256
    $region25: #{tpu_custom_call.1} parent=1 // pred_fallthru
      _
    %57 = vsyncpa [#allocation3], 1
    %58 = vsyncpa [#allocation6], 1
    %59 = vsyncpa [#allocation4], 1

</llo_original>
